<compile_context>
chip_gen: v6e
topology: v6e:2x2x1
jax: 0.10.0
libtpu: 0.0.40
codegen_flags: <defaults>
</compile_context>

<pallas_src>
import functools

import numpy as np
import jax
import jax.numpy as jnp
from jax import lax
from jax.experimental import pallas as pl
from jax.experimental.pallas import tpu as pltpu

# Representative architecture dimensions (small, deterministic).
N_BATCH = 2
C_IN, C1, C2 = 4, 8, 16
H = W = 16
LEAKY = 0.2

_PAD = 128   # lane-aligned padding on each side of the staged feature map
_OFFSETS = [(dh, dw) for dh in (-1, 0, 1) for dw in (-1, 0, 1)]


def _pick_b_tile(n, max_tile=8):
    """Images packed per grid step; keep >=2 grid steps for v7x megacore."""
    if n < 2:
        return 1
    for bt in range(min(max_tile, n // 2), 0, -1):
        if n % bt == 0:
            return bt
    return 1


def _build_masks(height, width, b_tile):
    """(9, b_tile*H*W) f32 0/1 masks implementing the conv zero padding.

    Row k = offset (dh, dw); mask is 1 iff (hh+dh, ww+dw) is inside the image.
    The hh component also kills cross-image leakage at seams when b_tile > 1.
    Computed once at trace time with numpy (static shapes) -> constant input.
    """
    m_img = height * width
    col = np.arange(b_tile * m_img)
    ww = col % width
    hh = (col % m_img) // width
    rows = []
    for dh, dw in _OFFSETS:
        valid = np.ones(col.shape, np.bool_)
        if dh:
            valid &= (hh + dh >= 0) & (hh + dh <= height - 1)
        if dw:
            valid &= (ww + dw >= 0) & (ww + dw <= width - 1)
        rows.append(valid.astype(np.float32))
    return jnp.asarray(np.stack(rows, axis=0))


def _conv3x3_lrelu(xp_ref, masks_ref, w_mat, b, *, c_in, m, width, slope):
    """3x3 'same' conv + LeakyReLU as ONE im2col GEMM for the staged tile.

    xp_ref:    (c_in, m + 2*_PAD) f32 staging scratch; center holds the
               activations, the two _PAD slabs are zero.
    masks_ref: (9, m) f32 precomputed edge masks.
    w_mat:     (c_out, 9*c_in) bf16, columns ordered (di, dj, ci).
    b:         (c_out, 1) f32.
    Returns (c_out, m) f32, lane-dense.
    """
    chunks = []
    for k, (dh, dw) in enumerate(_OFFSETS):
        shift = dh * width + dw
        patch = xp_ref[0:c_in, _PAD + shift:_PAD + shift + m]   # (c_in, m)
        if (dh, dw) != (0, 0):
            # One VPU multiply per offset; mask covers ww edges, hh edges and
            # image seams, so every invalid flat read is zeroed.
            patch = patch * masks_ref[k:k + 1, :]
        chunks.append(patch)
    # Aligned 8-row chunks -> single (9*c_in, m) operand; one MXU weight push.
    patches = jnp.concatenate(chunks, axis=0).astype(jnp.bfloat16)
    acc = jnp.dot(w_mat, patches, preferred_element_type=jnp.float32) + b
    return jnp.where(acc > 0, acc, slope * acc)


def _forward_kernel(x_ref, masks_ref, w1_ref, b1_ref, w2_ref, b2_ref,
                    fcw_ref, fcb_ref, o_ref, xp_ref, *,
                    height, width, b_tile, slope):
    """One grid step == b_tile images packed along the lane (spatial) axis."""
    m_img = height * width
    m = b_tile * m_img
    c1 = w1_ref.shape[0]

    # Zero ONLY the two padding slabs; the data columns are fully re-staged by
    # each conv. Not gated on program_id (each core owns its own scratch).
    pad_zeros = jnp.zeros((xp_ref.shape[0], _PAD), jnp.float32)
    xp_ref[:, 0:_PAD] = pad_zeros
    xp_ref[:, _PAD + m:_PAD + m + _PAD] = pad_zeros

    # conv1 (input channels already zero-padded to c1 in the wrapper).
    xp_ref[:, _PAD:_PAD + m] = x_ref[0]                       # (c1, m)
    y1 = _conv3x3_lrelu(xp_ref, masks_ref, w1_ref[...], b1_ref[...],
                        c_in=c1, m=m, width=width, slope=slope)   # (C1, m)

    # conv2 has stride 2 / pad 1: evaluate it on the full stride-1 grid (the
    # sparse FC map below selects exactly the even (h, w) positions, so no
    # strided subsample / gather is ever needed).
    xp_ref[0:c1, _PAD:_PAD + m] = y1
    y2 = _conv3x3_lrelu(xp_ref, masks_ref, w2_ref[...], b2_ref[...],
                        c_in=c1, m=m, width=width, slope=slope)   # (C2, m)

    # Flatten (NCHW) + Linear(->1): VPU multiply + reduction against the
    # pre-permuted sparse FC map; per-image segmented sum over the lane axis.
    prod = y2 * fcw_ref[...]                                   # (C2, m) f32
    colsum = jnp.sum(prod, axis=0, keepdims=True)              # (1, m)
    per_img = colsum.reshape(b_tile, m_img)                    # (b_tile, m_img)
    logit = jnp.sum(per_img, axis=1, keepdims=True) + fcb_ref[0, 0]
    o_ref[0] = jnp.broadcast_to(logit, (b_tile, 128))          # lane-dense store


def model_evolve_forward(kparams, x):
    """ModelEvolve.forward(input) == self.architecture(input), one fused kernel."""
    n, c_in, h, w = x.shape
    m_img = h * w
    c1 = kparams["w1"].shape[0]

    # Pad input channels up to C1 so both convs share the same aligned K=9*C1.
    if c_in < c1:
        x = jnp.pad(x, ((0, 0), (0, c1 - c_in), (0, 0), (0, 0)))

    b_tile = _pick_b_tile(n)
    n_steps = n // b_tile
    m_tot = b_tile * m_img

    # Pack b_tile images side-by-side along the lane axis (image-major).
    xp = (x.reshape(n_steps, b_tile, c1, m_img)
            .transpose(0, 2, 1, 3)
            .reshape(n_steps, c1, m_tot))
    masks = _build_masks(h, w, b_tile)                  # constant, tiny
    fcw = jnp.tile(kparams["fcw"], (1, b_tile))         # same FC map per image

    kernel = functools.partial(_forward_kernel, height=h, width=w,
                               b_tile=b_tile, slope=LEAKY)
    out = pl.pallas_call(
        kernel,
        out_shape=jax.ShapeDtypeStruct((n_steps, b_tile, 128), jnp.float32),
        grid=(n_steps,),
        in_specs=[
            pl.BlockSpec((1, c1, m_tot), lambda i: (i, 0, 0)),      # x tile
            pl.BlockSpec(masks.shape, lambda i: (0, 0)),            # edge masks
            pl.BlockSpec(kparams["w1"].shape, lambda i: (0, 0)),    # bf16
            pl.BlockSpec(kparams["b1"].shape, lambda i: (0, 0)),    # f32
            pl.BlockSpec(kparams["w2"].shape, lambda i: (0, 0)),    # bf16
            pl.BlockSpec(kparams["b2"].shape, lambda i: (0, 0)),    # f32
            pl.BlockSpec(fcw.shape, lambda i: (0, 0)),              # sparse FC map
            pl.BlockSpec(memory_space=pltpu.MemorySpace.SMEM),      # fcb scalar
        ],
        out_specs=pl.BlockSpec((1, b_tile, 128), lambda i: (i, 0, 0)),
        scratch_shapes=[
            pltpu.VMEM((c1, m_tot + 2 * _PAD), jnp.float32),        # padded stage
        ],
        compiler_params=pltpu.CompilerParams(
            dimension_semantics=("parallel",)),     # v7x: split steps over TCs
    )(xp, masks, kparams["w1"], kparams["b1"], kparams["w2"], kparams["b2"],
      fcw, kparams["fcb"])
    return out.reshape(n, 128)[:, :1]                # (n, 1) logits


def init_params(key):
    """Deterministic PyTorch-layout parameters for the representative net."""
    k = jax.random.split(key, 6)
    scale = 0.1
    return {
        "conv1_w": scale * jax.random.normal(k[0], (C1, C_IN, 3, 3), jnp.float32),
        "conv1_b": scale * jax.random.normal(k[1], (C1,), jnp.float32),
        "conv2_w": scale * jax.random.normal(k[2], (C2, C1, 3, 3), jnp.float32),
        "conv2_b": scale * jax.random.normal(k[3], (C2,), jnp.float32),
        "fc_w":    scale * jax.random.normal(
            k[4], (1, C2 * (H // 2) * (W // 2)), jnp.float32),
        "fc_b":    scale * jax.random.normal(k[5], (1,), jnp.float32),
    }


def prepare_kernel_params(params):
    """One-time repack of PyTorch-layout weights into kernel-friendly layouts."""
    c1, c_in = params["conv1_w"].shape[:2]
    c2 = params["conv2_w"].shape[0]
    # Pad conv1 input channels to C1 (zero weight columns) so both convs share
    # K = 9*C1 and every im2col chunk is an aligned 8-sublane block.
    w1_oihw = jnp.pad(params["conv1_w"], ((0, 0), (0, c1 - c_in), (0, 0), (0, 0)))
    # OIHW -> (O, kh, kw, I) -> (C_out, 9*C), columns ordered (di, dj, ci);
    # pre-cast to bf16 once (MXU-native on v5e/v6e/v7x).
    w1 = w1_oihw.transpose(0, 2, 3, 1).reshape(c1, 9 * c1).astype(jnp.bfloat16)
    w2 = (params["conv2_w"].transpose(0, 2, 3, 1)
          .reshape(c2, 9 * c1).astype(jnp.bfloat16))
    b1 = params["conv1_b"].reshape(c1, 1)
    b2 = params["conv2_b"].reshape(c2, 1)
    # FC weight (1, C2*(H/2)*(W/2)), NCHW flatten order: scatter onto the full
    # stride-1 conv2 grid (zeros at odd h/w) so stride-2 subsample + flatten +
    # Linear collapse into one multiply + sum.
    fc3 = params["fc_w"].reshape(c2, H // 2, W // 2)
    fcw = jnp.zeros((c2, H, W), jnp.float32).at[:, ::2, ::2].set(fc3)
    fcw = fcw.reshape(c2, H * W)
    fcb = params["fc_b"].reshape(1, 1)
    return {"w1": w1, "b1": b1, "w2": w2, "b2": b2, "fcw": fcw, "fcb": fcb}


def _leaky(x):
    return jnp.where(x > 0, x, LEAKY * x)


def reference_forward(params, x):
    """Pure-JAX (XLA) reference with PyTorch semantics, for validation."""
    dn = ("NCHW", "OIHW", "NCHW")
    y1 = lax.conv_general_dilated(x, params["conv1_w"], (1, 1),
                                  ((1, 1), (1, 1)), dimension_numbers=dn)
    y1 = _leaky(y1 + params["conv1_b"][None, :, None, None])
    y2 = lax.conv_general_dilated(y1, params["conv2_w"], (2, 2),
                                  ((1, 1), (1, 1)), dimension_numbers=dn)
    y2 = _leaky(y2 + params["conv2_b"][None, :, None, None])
    flat = y2.reshape(x.shape[0], -1)
    return flat @ params["fc_w"].T + params["fc_b"][None, :]


if __name__ == "__main__":
    key = jax.random.PRNGKey(0)
    pkey, xkey = jax.random.split(key)
    params = init_params(pkey)
    kparams = prepare_kernel_params(params)           # weight repack, done once
    x = jax.random.normal(xkey, (N_BATCH, C_IN, H, W), jnp.float32)   # NCHW

    out = jax.jit(model_evolve_forward)(kparams, x)
    out = jax.block_until_ready(out)
    assert out.shape == (N_BATCH, 1) and out.dtype == jnp.float32

    ref = reference_forward(params, x)
    assert jnp.allclose(out, ref, rtol=5e-2, atol=5e-2), (out, ref)
    print("KERNEL_OK")
</pallas_src>

<mosaic_0001>
module attributes {stable_mosaic.version = 11 : i64} {
  func.func @_forward_kernel(%arg0: i32, %arg1: memref<1x8x256xf32, #tpu.memory_space<vmem>>, %arg2: memref<9x256xf32, #tpu.memory_space<vmem>>, %arg3: memref<8x72xbf16, #tpu.memory_space<vmem>>, %arg4: memref<8x1xf32, #tpu.memory_space<vmem>>, %arg5: memref<16x72xbf16, #tpu.memory_space<vmem>>, %arg6: memref<16x1xf32, #tpu.memory_space<vmem>>, %arg7: memref<16x256xf32, #tpu.memory_space<vmem>>, %arg8: memref<1x1xf32, #tpu.memory_space<smem>>, %arg9: memref<1x1x128xf32, #tpu.memory_space<vmem>>, %arg10: memref<8x512xf32, #tpu.memory_space<vmem>>) attributes {dimension_semantics = [#tpu.dimension_semantics<parallel>], iteration_bounds = array<i64: 2>, scalar_prefetch = 0 : i64, scratch_operands = 1 : i64, tpu.core_type = #tpu.core_type<tc>, window_params = [{transform_indices = @transform_0, window_bounds = array<i64: 1, 8, 256>}, {pipeline_mode = #tpu.pipeline_mode<synchronous>, transform_indices = @transform_1, window_bounds = array<i64: 9, 256>}, {pipeline_mode = #tpu.pipeline_mode<synchronous>, transform_indices = @transform_2, window_bounds = array<i64: 8, 72>}, {pipeline_mode = #tpu.pipeline_mode<synchronous>, transform_indices = @transform_3, window_bounds = array<i64: 8, 1>}, {pipeline_mode = #tpu.pipeline_mode<synchronous>, transform_indices = @transform_4, window_bounds = array<i64: 16, 72>}, {pipeline_mode = #tpu.pipeline_mode<synchronous>, transform_indices = @transform_5, window_bounds = array<i64: 16, 1>}, {pipeline_mode = #tpu.pipeline_mode<synchronous>, transform_indices = @transform_6, window_bounds = array<i64: 16, 256>}, {transform_indices = @transform_7, window_bounds = array<i64: 1, 1>}, {transform_indices = @transform_8, window_bounds = array<i64: 1, 1, 128>}]} {
    %cst = arith.constant 0.000000e+00 : f32
    %0 = vector.broadcast %cst : f32 to vector<8x128xf32>
    %c0 = arith.constant 0 : index
    %c0_0 = arith.constant 0 : index
    %1 = vector.load %arg10[%c0, %c0_0] : memref<8x512xf32, #tpu.memory_space<vmem>>, vector<8x128xf32>
    tpu.vector_store %arg10[%c0, %c0_0], %0 {strides = array<i32>} : memref<8x512xf32, #tpu.memory_space<vmem>>, vector<8x128xf32>,
    %c0_1 = arith.constant 0 : index
    %c384 = arith.constant 384 : index
    %2 = vector.load %arg10[%c0_1, %c384] : memref<8x512xf32, #tpu.memory_space<vmem>>, vector<8x128xf32>
    tpu.vector_store %arg10[%c0_1, %c384], %0 {strides = array<i32>} : memref<8x512xf32, #tpu.memory_space<vmem>>, vector<8x128xf32>,
    %c0_2 = arith.constant 0 : index
    %c0_3 = arith.constant 0 : index
    %c0_4 = arith.constant 0 : index
    %3 = vector.load %arg1[%c0_2, %c0_3, %c0_4] : memref<1x8x256xf32, #tpu.memory_space<vmem>>, vector<1x8x256xf32>
    %4 = vector.shape_cast %3 : vector<1x8x256xf32> to vector<8x256xf32>
    %c0_5 = arith.constant 0 : index
    %c128 = arith.constant 128 : index
    %5 = vector.load %arg10[%c0_5, %c128] : memref<8x512xf32, #tpu.memory_space<vmem>>, vector<8x256xf32>
    tpu.vector_store %arg10[%c0_5, %c128], %4 {strides = array<i32>} : memref<8x512xf32, #tpu.memory_space<vmem>>, vector<8x256xf32>,
    %c0_6 = arith.constant 0 : index
    %c0_7 = arith.constant 0 : index
    %6 = vector.load %arg3[%c0_6, %c0_7] : memref<8x72xbf16, #tpu.memory_space<vmem>>, vector<8x72xbf16>
    %c0_8 = arith.constant 0 : index
    %c0_9 = arith.constant 0 : index
    %7 = vector.load %arg4[%c0_8, %c0_9] : memref<8x1xf32, #tpu.memory_space<vmem>>, vector<8x1xf32>
    %c0_10 = arith.constant 0 : index
    %c111 = arith.constant 111 : index
    %8 = vector.load %arg10[%c0_10, %c111] : memref<8x512xf32, #tpu.memory_space<vmem>>, vector<8x256xf32>
    %c0_11 = arith.constant 0 : index
    %c0_12 = arith.constant 0 : index
    %9 = vector.load %arg2[%c0_11, %c0_12] : memref<9x256xf32, #tpu.memory_space<vmem>>, vector<1x256xf32>
    %10 = vector.broadcast %9 : vector<1x256xf32> to vector<8x256xf32>
    %11 = arith.mulf %8, %10 : vector<8x256xf32>
    %c0_13 = arith.constant 0 : index
    %c112 = arith.constant 112 : index
    %12 = vector.load %arg10[%c0_13, %c112] : memref<8x512xf32, #tpu.memory_space<vmem>>, vector<8x256xf32>
    %c1 = arith.constant 1 : index
    %c0_14 = arith.constant 0 : index
    %13 = vector.load %arg2[%c1, %c0_14] : memref<9x256xf32, #tpu.memory_space<vmem>>, vector<1x256xf32>
    %14 = vector.broadcast %13 : vector<1x256xf32> to vector<8x256xf32>
    %15 = arith.mulf %12, %14 : vector<8x256xf32>
    %c0_15 = arith.constant 0 : index
    %c113 = arith.constant 113 : index
    %16 = vector.load %arg10[%c0_15, %c113] : memref<8x512xf32, #tpu.memory_space<vmem>>, vector<8x256xf32>
    %c2 = arith.constant 2 : index
    %c0_16 = arith.constant 0 : index
    %17 = vector.load %arg2[%c2, %c0_16] : memref<9x256xf32, #tpu.memory_space<vmem>>, vector<1x256xf32>
    %18 = vector.broadcast %17 : vector<1x256xf32> to vector<8x256xf32>
    %19 = arith.mulf %16, %18 : vector<8x256xf32>
    %c0_17 = arith.constant 0 : index
    %c127 = arith.constant 127 : index
    %20 = vector.load %arg10[%c0_17, %c127] : memref<8x512xf32, #tpu.memory_space<vmem>>, vector<8x256xf32>
    %c3 = arith.constant 3 : index
    %c0_18 = arith.constant 0 : index
    %21 = vector.load %arg2[%c3, %c0_18] : memref<9x256xf32, #tpu.memory_space<vmem>>, vector<1x256xf32>
    %22 = vector.broadcast %21 : vector<1x256xf32> to vector<8x256xf32>
    %23 = arith.mulf %20, %22 : vector<8x256xf32>
    %c0_19 = arith.constant 0 : index
    %c128_20 = arith.constant 128 : index
    %24 = vector.load %arg10[%c0_19, %c128_20] : memref<8x512xf32, #tpu.memory_space<vmem>>, vector<8x256xf32>
    %c0_21 = arith.constant 0 : index
    %c129 = arith.constant 129 : index
    %25 = vector.load %arg10[%c0_21, %c129] : memref<8x512xf32, #tpu.memory_space<vmem>>, vector<8x256xf32>
    %c5 = arith.constant 5 : index
    %c0_22 = arith.constant 0 : index
    %26 = vector.load %arg2[%c5, %c0_22] : memref<9x256xf32, #tpu.memory_space<vmem>>, vector<1x256xf32>
    %27 = vector.broadcast %26 : vector<1x256xf32> to vector<8x256xf32>
    %28 = arith.mulf %25, %27 : vector<8x256xf32>
    %c0_23 = arith.constant 0 : index
    %c143 = arith.constant 143 : index
    %29 = vector.load %arg10[%c0_23, %c143] : memref<8x512xf32, #tpu.memory_space<vmem>>, vector<8x256xf32>
    %c6 = arith.constant 6 : index
    %c0_24 = arith.constant 0 : index
    %30 = vector.load %arg2[%c6, %c0_24] : memref<9x256xf32, #tpu.memory_space<vmem>>, vector<1x256xf32>
    %31 = vector.broadcast %30 : vector<1x256xf32> to vector<8x256xf32>
    %32 = arith.mulf %29, %31 : vector<8x256xf32>
    %c0_25 = arith.constant 0 : index
    %c144 = arith.constant 144 : index
    %33 = vector.load %arg10[%c0_25, %c144] : memref<8x512xf32, #tpu.memory_space<vmem>>, vector<8x256xf32>
    %c7 = arith.constant 7 : index
    %c0_26 = arith.constant 0 : index
    %34 = vector.load %arg2[%c7, %c0_26] : memref<9x256xf32, #tpu.memory_space<vmem>>, vector<1x256xf32>
    %35 = vector.broadcast %34 : vector<1x256xf32> to vector<8x256xf32>
    %36 = arith.mulf %33, %35 : vector<8x256xf32>
    %c0_27 = arith.constant 0 : index
    %c145 = arith.constant 145 : index
    %37 = vector.load %arg10[%c0_27, %c145] : memref<8x512xf32, #tpu.memory_space<vmem>>, vector<8x256xf32>
    %c8 = arith.constant 8 : index
    %c0_28 = arith.constant 0 : index
    %38 = vector.load %arg2[%c8, %c0_28] : memref<9x256xf32, #tpu.memory_space<vmem>>, vector<1x256xf32>
    %39 = vector.broadcast %38 : vector<1x256xf32> to vector<8x256xf32>
    %40 = arith.mulf %37, %39 : vector<8x256xf32>
    %41 = tpu.concatenate %11, %15, %19, %23, %24, %28, %32, %36, %40 in 0 : vector<8x256xf32>, vector<8x256xf32>, vector<8x256xf32>, vector<8x256xf32>, vector<8x256xf32>, vector<8x256xf32>, vector<8x256xf32>, vector<8x256xf32>, vector<8x256xf32> -> vector<72x256xf32>
    %42 = arith.truncf %41 : vector<72x256xf32> to vector<72x256xbf16>
    %cst_29 = arith.constant dense<0.000000e+00> : vector<8x256xf32>
    %43 = tpu.matmul %6, %42, %cst_29 {dimension_numbers = #tpu.dot_dimension_numbers<[1], [0], [0], [1], [0, 0, 1, 1], [], []>} : vector<8x72xbf16>, vector<72x256xbf16>, vector<8x256xf32> -> vector<8x256xf32>
    %44 = vector.broadcast %7 : vector<8x1xf32> to vector<8x256xf32>
    %45 = arith.addf %43, %44 : vector<8x256xf32>
    %cst_30 = arith.constant 0.000000e+00 : f32
    %46 = vector.broadcast %cst_30 : f32 to vector<8x256xf32>
    %47 = arith.cmpf ogt, %45, %46 : vector<8x256xf32>
    %cst_31 = arith.constant 2.000000e-01 : f32
    %48 = vector.broadcast %cst_31 : f32 to vector<8x256xf32>
    %49 = arith.mulf %48, %45 : vector<8x256xf32>
    %50 = arith.select %47, %45, %49 : vector<8x256xi1>, vector<8x256xf32>
    %c0_32 = arith.constant 0 : index
    %c128_33 = arith.constant 128 : index
    %51 = vector.load %arg10[%c0_32, %c128_33] : memref<8x512xf32, #tpu.memory_space<vmem>>, vector<8x256xf32>
    tpu.vector_store %arg10[%c0_32, %c128_33], %50 {strides = array<i32>} : memref<8x512xf32, #tpu.memory_space<vmem>>, vector<8x256xf32>,
    %c0_34 = arith.constant 0 : index
    %c0_35 = arith.constant 0 : index
    %52 = vector.load %arg5[%c0_34, %c0_35] : memref<16x72xbf16, #tpu.memory_space<vmem>>, vector<16x72xbf16>
    %c0_36 = arith.constant 0 : index
    %c0_37 = arith.constant 0 : index
    %53 = vector.load %arg6[%c0_36, %c0_37] : memref<16x1xf32, #tpu.memory_space<vmem>>, vector<16x1xf32>
    %c0_38 = arith.constant 0 : index
    %c111_39 = arith.constant 111 : index
    %54 = vector.load %arg10[%c0_38, %c111_39] : memref<8x512xf32, #tpu.memory_space<vmem>>, vector<8x256xf32>
    %c0_40 = arith.constant 0 : index
    %c0_41 = arith.constant 0 : index
    %55 = vector.load %arg2[%c0_40, %c0_41] : memref<9x256xf32, #tpu.memory_space<vmem>>, vector<1x256xf32>
    %56 = vector.broadcast %55 : vector<1x256xf32> to vector<8x256xf32>
    %57 = arith.mulf %54, %56 : vector<8x256xf32>
    %c0_42 = arith.constant 0 : index
    %c112_43 = arith.constant 112 : index
    %58 = vector.load %arg10[%c0_42, %c112_43] : memref<8x512xf32, #tpu.memory_space<vmem>>, vector<8x256xf32>
    %c1_44 = arith.constant 1 : index
    %c0_45 = arith.constant 0 : index
    %59 = vector.load %arg2[%c1_44, %c0_45] : memref<9x256xf32, #tpu.memory_space<vmem>>, vector<1x256xf32>
    %60 = vector.broadcast %59 : vector<1x256xf32> to vector<8x256xf32>
    %61 = arith.mulf %58, %60 : vector<8x256xf32>
    %c0_46 = arith.constant 0 : index
    %c113_47 = arith.constant 113 : index
    %62 = vector.load %arg10[%c0_46, %c113_47] : memref<8x512xf32, #tpu.memory_space<vmem>>, vector<8x256xf32>
    %c2_48 = arith.constant 2 : index
    %c0_49 = arith.constant 0 : index
    %63 = vector.load %arg2[%c2_48, %c0_49] : memref<9x256xf32, #tpu.memory_space<vmem>>, vector<1x256xf32>
    %64 = vector.broadcast %63 : vector<1x256xf32> to vector<8x256xf32>
    %65 = arith.mulf %62, %64 : vector<8x256xf32>
    %c0_50 = arith.constant 0 : index
    %c127_51 = arith.constant 127 : index
    %66 = vector.load %arg10[%c0_50, %c127_51] : memref<8x512xf32, #tpu.memory_space<vmem>>, vector<8x256xf32>
    %c3_52 = arith.constant 3 : index
    %c0_53 = arith.constant 0 : index
    %67 = vector.load %arg2[%c3_52, %c0_53] : memref<9x256xf32, #tpu.memory_space<vmem>>, vector<1x256xf32>
    %68 = vector.broadcast %67 : vector<1x256xf32> to vector<8x256xf32>
    %69 = arith.mulf %66, %68 : vector<8x256xf32>
    %c0_54 = arith.constant 0 : index
    %c128_55 = arith.constant 128 : index
    %70 = vector.load %arg10[%c0_54, %c128_55] : memref<8x512xf32, #tpu.memory_space<vmem>>, vector<8x256xf32>
    %c0_56 = arith.constant 0 : index
    %c129_57 = arith.constant 129 : index
    %71 = vector.load %arg10[%c0_56, %c129_57] : memref<8x512xf32, #tpu.memory_space<vmem>>, vector<8x256xf32>
    %c5_58 = arith.constant 5 : index
    %c0_59 = arith.constant 0 : index
    %72 = vector.load %arg2[%c5_58, %c0_59] : memref<9x256xf32, #tpu.memory_space<vmem>>, vector<1x256xf32>
    %73 = vector.broadcast %72 : vector<1x256xf32> to vector<8x256xf32>
    %74 = arith.mulf %71, %73 : vector<8x256xf32>
    %c0_60 = arith.constant 0 : index
    %c143_61 = arith.constant 143 : index
    %75 = vector.load %arg10[%c0_60, %c143_61] : memref<8x512xf32, #tpu.memory_space<vmem>>, vector<8x256xf32>
    %c6_62 = arith.constant 6 : index
    %c0_63 = arith.constant 0 : index
    %76 = vector.load %arg2[%c6_62, %c0_63] : memref<9x256xf32, #tpu.memory_space<vmem>>, vector<1x256xf32>
    %77 = vector.broadcast %76 : vector<1x256xf32> to vector<8x256xf32>
    %78 = arith.mulf %75, %77 : vector<8x256xf32>
    %c0_64 = arith.constant 0 : index
    %c144_65 = arith.constant 144 : index
    %79 = vector.load %arg10[%c0_64, %c144_65] : memref<8x512xf32, #tpu.memory_space<vmem>>, vector<8x256xf32>
    %c7_66 = arith.constant 7 : index
    %c0_67 = arith.constant 0 : index
    %80 = vector.load %arg2[%c7_66, %c0_67] : memref<9x256xf32, #tpu.memory_space<vmem>>, vector<1x256xf32>
    %81 = vector.broadcast %80 : vector<1x256xf32> to vector<8x256xf32>
    %82 = arith.mulf %79, %81 : vector<8x256xf32>
    %c0_68 = arith.constant 0 : index
    %c145_69 = arith.constant 145 : index
    %83 = vector.load %arg10[%c0_68, %c145_69] : memref<8x512xf32, #tpu.memory_space<vmem>>, vector<8x256xf32>
    %c8_70 = arith.constant 8 : index
    %c0_71 = arith.constant 0 : index
    %84 = vector.load %arg2[%c8_70, %c0_71] : memref<9x256xf32, #tpu.memory_space<vmem>>, vector<1x256xf32>
    %85 = vector.broadcast %84 : vector<1x256xf32> to vector<8x256xf32>
    %86 = arith.mulf %83, %85 : vector<8x256xf32>
    %87 = tpu.concatenate %57, %61, %65, %69, %70, %74, %78, %82, %86 in 0 : vector<8x256xf32>, vector<8x256xf32>, vector<8x256xf32>, vector<8x256xf32>, vector<8x256xf32>, vector<8x256xf32>, vector<8x256xf32>, vector<8x256xf32>, vector<8x256xf32> -> vector<72x256xf32>
    %88 = arith.truncf %87 : vector<72x256xf32> to vector<72x256xbf16>
    %cst_72 = arith.constant dense<0.000000e+00> : vector<16x256xf32>
    %89 = tpu.matmul %52, %88, %cst_72 {dimension_numbers = #tpu.dot_dimension_numbers<[1], [0], [0], [1], [0, 0, 1, 1], [], []>} : vector<16x72xbf16>, vector<72x256xbf16>, vector<16x256xf32> -> vector<16x256xf32>
    %90 = vector.broadcast %53 : vector<16x1xf32> to vector<16x256xf32>
    %91 = arith.addf %89, %90 : vector<16x256xf32>
    %cst_73 = arith.constant 0.000000e+00 : f32
    %92 = vector.broadcast %cst_73 : f32 to vector<16x256xf32>
    %93 = arith.cmpf ogt, %91, %92 : vector<16x256xf32>
    %cst_74 = arith.constant 2.000000e-01 : f32
    %94 = vector.broadcast %cst_74 : f32 to vector<16x256xf32>
    %95 = arith.mulf %94, %91 : vector<16x256xf32>
    %96 = arith.select %93, %91, %95 : vector<16x256xi1>, vector<16x256xf32>
    %c0_75 = arith.constant 0 : index
    %c0_76 = arith.constant 0 : index
    %97 = vector.load %arg7[%c0_75, %c0_76] : memref<16x256xf32, #tpu.memory_space<vmem>>, vector<16x256xf32>
    %98 = arith.mulf %96, %97 : vector<16x256xf32>
    %cst_77 = arith.constant dense<0.000000e+00> : vector<256xf32>
    %99 = vector.multi_reduction <add>, %98, %cst_77 [0] : vector<16x256xf32> to vector<256xf32>
    %100 = vector.shape_cast %99 : vector<256xf32> to vector<1x256xf32>
    %cst_78 = arith.constant dense<0.000000e+00> : vector<1xf32>
    %101 = vector.multi_reduction <add>, %100, %cst_78 [1] : vector<1x256xf32> to vector<1xf32>
    %102 = vector.shape_cast %101 : vector<1xf32> to vector<1x1xf32>
    %c0_79 = arith.constant 0 : index
    %c0_80 = arith.constant 0 : index
    %103 = memref.load %arg8[%c0_79, %c0_80] : memref<1x1xf32, #tpu.memory_space<smem>>
    %104 = vector.broadcast %103 : f32 to vector<1x1xf32>
    %105 = arith.addf %102, %104 : vector<1x1xf32>
    %106 = vector.shape_cast %105 : vector<1x1xf32> to vector<1x1xf32>
    %107 = vector.broadcast %106 : vector<1x1xf32> to vector<1x128xf32>
    %c0_81 = arith.constant 0 : index
    %c0_82 = arith.constant 0 : index
    %c0_83 = arith.constant 0 : index
    %108 = vector.load %arg9[%c0_81, %c0_82, %c0_83] : memref<1x1x128xf32, #tpu.memory_space<vmem>>, vector<1x1x128xf32>
    %109 = vector.shape_cast %108 : vector<1x1x128xf32> to vector<1x128xf32>
    %110 = vector.shape_cast %107 : vector<1x128xf32> to vector<1x1x128xf32>
    tpu.vector_store %arg9[%c0_81, %c0_82, %c0_83], %110 {strides = array<i32>} : memref<1x1x128xf32, #tpu.memory_space<vmem>>, vector<1x1x128xf32>,
    return
  }
  func.func @transform_0(%arg0: i32) -> (i32, i32, i32) {
    %c0_i32 = arith.constant 0 : i32
    %c0_i32_0 = arith.constant 0 : i32
    %c0_i32_1 = arith.constant 0 : i32
    return %arg0, %c0_i32, %c0_i32_0 : i32, i32, i32
  }
  func.func @transform_1(%arg0: i32) -> (i32, i32) {
    %c0_i32 = arith.constant 0 : i32
    %c0_i32_0 = arith.constant 0 : i32
    %c0_i32_1 = arith.constant 0 : i32
    return %c0_i32, %c0_i32_0 : i32, i32
  }
  func.func @transform_2(%arg0: i32) -> (i32, i32) {
    %c0_i32 = arith.constant 0 : i32
    %c0_i32_0 = arith.constant 0 : i32
    %c0_i32_1 = arith.constant 0 : i32
    return %c0_i32, %c0_i32_0 : i32, i32
  }
  func.func @transform_3(%arg0: i32) -> (i32, i32) {
    %c0_i32 = arith.constant 0 : i32
    %c0_i32_0 = arith.constant 0 : i32
    %c0_i32_1 = arith.constant 0 : i32
    return %c0_i32, %c0_i32_0 : i32, i32
  }
  func.func @transform_4(%arg0: i32) -> (i32, i32) {
    %c0_i32 = arith.constant 0 : i32
    %c0_i32_0 = arith.constant 0 : i32
    %c0_i32_1 = arith.constant 0 : i32
    return %c0_i32, %c0_i32_0 : i32, i32
  }
  func.func @transform_5(%arg0: i32) -> (i32, i32) {
    %c0_i32 = arith.constant 0 : i32
    %c0_i32_0 = arith.constant 0 : i32
    %c0_i32_1 = arith.constant 0 : i32
    return %c0_i32, %c0_i32_0 : i32, i32
  }
  func.func @transform_6(%arg0: i32) -> (i32, i32) {
    %c0_i32 = arith.constant 0 : i32
    %c0_i32_0 = arith.constant 0 : i32
    %c0_i32_1 = arith.constant 0 : i32
    return %c0_i32, %c0_i32_0 : i32, i32
  }
  func.func @transform_7(%arg0: i32) -> (i32, i32) {
    %c0_i32 = arith.constant 0 : i32
    %c0_i32_0 = arith.constant 0 : i32
    %c0_i32_1 = arith.constant 0 : i32
    return %c0_i32, %c0_i32_0 : i32, i32
  }
  func.func @transform_8(%arg0: i32) -> (i32, i32, i32) {
    %c0_i32 = arith.constant 0 : i32
    %c0_i32_0 = arith.constant 0 : i32
    %c0_i32_1 = arith.constant 0 : i32
    return %arg0, %c0_i32, %c0_i32_0 : i32, i32, i32
  }
}

</mosaic_0001>

<llo_original>
// kernel: model_evolve_forward.1
$region0: #{model_evolve_forward.1}
  #allocation0 [shape = 'u32[]', space=smem, size = 0x4, offset = 0x4, fixed_abs, tag = 'smem constant byte address 0x4 - core index']
  #allocation1 [shape = 'u32[144,128]{1,0:T(1,128)}', space=vmem, size = 0x12000, scoped, tag = 'internal scratch']
  #allocation2 [shape = 'f32[8,512]{1,0:T(8,128)}', space=vmem, size = 0x4000, scoped, tag = 'scratch operand']
  #allocation3 [shape = 'f32[1,1]{1,0:T(1,128)S(6)}', space=smem, size = 0x200, scoped, tag = 'scoped memory for model_evolve_forward.1']
  %s0 = inlined_call_operand.vmem [shape: f32[2,8,256], index: 0, kind: input, shape index: {}]
  %s1 = inlined_call_operand.vmem [shape: f32[9,256], index: 1, kind: input, shape index: {}]
  %s2 = inlined_call_operand.vmem [shape: bf16[8,72], index: 2, kind: input, shape index: {}]
  %s3 = inlined_call_operand.vmem [shape: f32[8,1], index: 3, kind: input, shape index: {}]
  %s4 = inlined_call_operand.vmem [shape: bf16[16,72], index: 4, kind: input, shape index: {}]
  %s5 = inlined_call_operand.vmem [shape: f32[16,1], index: 5, kind: input, shape index: {}]
  %s6 = inlined_call_operand.vmem [shape: f32[16,256], index: 6, kind: input, shape index: {}]
  %s7 = inlined_call_operand.<no memory space> [shape: f32[1,1], index: 7, kind: input, shape index: {}]
  %s8 = inlined_call_operand.vmem [shape: f32[2,1,128], index: 8, kind: output, shape index: {}]
  %s9 = sld [smem:[#allocation0]]
  $region65: #{model_evolve_forward.1} parent=0
    _
  %s11 = ssub.s32 1, %s9
  %s12 = scalar_select 0, %s11, %s9
  %13 = sst [smem:[#allocation3]] %s7
  loop: start=0, step=1, limit=4
  $region2: #{model_evolve_forward.1} parent=0 // loop_pre_header
    _
  $region3: #{model_evolve_forward.1} parent=0 // loop_header
    %s15 = sphi 0, %s19
    %p16 = scmp.ge.s32.totalorder %s15, 4
    %s25 = sphi 0, %s27
    %s28 = sphi 0, %s25
    %s29 = sphi 0, %s28
    %s45 = sphi 0, %s29
    %s49 = sphi 0, %s49
    %s51 = sphi 0, %s49
    %s52 = sphi 0, %s51
    %s66 = sphi 0, %s52
    %s70 = sphi 0, %s70
    %s72 = sphi 0, %s70
    %s73 = sphi 0, %s72
    %s87 = sphi 0, %s73
    %s91 = sphi 0, %s91
    %s93 = sphi 0, %s91
    %s94 = sphi 0, %s93
    %s108 = sphi 0, %s94
    %s112 = sphi 0, %s112
    %s114 = sphi 0, %s112
    %s115 = sphi 0, %s114
    %s129 = sphi 0, %s115
    %s133 = sphi 0, %s133
    %s135 = sphi 0, %s133
    %s136 = sphi 0, %s135
    %s150 = sphi 0, %s136
    %s154 = sphi 0, %s154
    %s156 = sphi 0, %s154
    %s157 = sphi 0, %s156
    %s171 = sphi 0, %s157
    %s175 = sphi 0, %s175
    %s177 = sphi 0, %s175
    %s178 = sphi 0, %s177
    %s192 = sphi 0, %s178
    %s198 = sphi 0, %s200
    %s201 = sphi 0, %s198
    %s202 = sphi 0, %s201
    %s218 = sphi 0, %s202
  $region4: #{model_evolve_forward.1} parent=0 // loop_header_branch
    %18 = sbr.rel (%p16) target = $region8
  $region5: #{model_evolve_forward.1} parent=0 // loop_body
    %s20 = ssub.s32 %s15, 1
    %s21 = ssub.s32 %s15, 2
    %s22 = sadd.s32 %s15, 1
    %s23 = ssub.s32 %s15, %s22
    %p24 = scmp.eq.s32.totalorder %s23, 0
    %s26 = sadd.s32 %s25, 1
    %s27 = scalar_select %p24, %s25, %s26
    %p30 = pneg %p24
    %p31 = scmp.eq.s32.totalorder %s15, 1
    %p32 = por %p30, %p31
    %p33 = scmp.ne.s32.totalorder %s25, %s28
    %p34 = scmp.eq.s32.totalorder %s15, 0
    %p35 = por %p33, %p34
    %p36 = scmp.ne.s32.totalorder %s25, %s28
    %p37 = scmp.eq.s32.totalorder %s20, 1
    %p38 = por %p36, %p37
    %p39 = scmp.ne.s32.totalorder %s28, %s29
    %p40 = scmp.eq.s32.totalorder %s20, 0
    %p41 = por %p39, %p40
    %p42 = scmp.ne.s32.totalorder %s28, %s29
    %p43 = scmp.eq.s32.totalorder %s21, 1
    %p44 = por %p42, %p43
    %p46 = scmp.ne.s32.totalorder %s29, %s45
    %p47 = scmp.eq.s32.totalorder %s21, 0
    %p48 = por %p46, %p47
    %s50 = sadd.s32 %s49, 1
    %p53 = scmp.eq.s32.totalorder %s15, 1
    %p54 = scmp.ne.s32.totalorder %s49, %s51
    %p55 = scmp.eq.s32.totalorder %s15, 0
    %p56 = por %p54, %p55
    %p57 = scmp.ne.s32.totalorder %s49, %s51
    %p58 = scmp.eq.s32.totalorder %s20, 1
    %p59 = por %p57, %p58
    %p60 = scmp.ne.s32.totalorder %s51, %s52
    %p61 = scmp.eq.s32.totalorder %s20, 0
    %p62 = por %p60, %p61
    %p63 = scmp.ne.s32.totalorder %s51, %s52
    %p64 = scmp.eq.s32.totalorder %s21, 1
    %p65 = por %p63, %p64
    %p67 = scmp.ne.s32.totalorder %s52, %s66
    %p68 = scmp.eq.s32.totalorder %s21, 0
    %p69 = por %p67, %p68
    %s71 = sadd.s32 %s70, 1
    %p74 = scmp.eq.s32.totalorder %s15, 1
    %p75 = scmp.ne.s32.totalorder %s70, %s72
    %p76 = scmp.eq.s32.totalorder %s15, 0
    %p77 = por %p75, %p76
    %p78 = scmp.ne.s32.totalorder %s70, %s72
    %p79 = scmp.eq.s32.totalorder %s20, 1
    %p80 = por %p78, %p79
    %p81 = scmp.ne.s32.totalorder %s72, %s73
    %p82 = scmp.eq.s32.totalorder %s20, 0
    %p83 = por %p81, %p82
    %p84 = scmp.ne.s32.totalorder %s72, %s73
    %p85 = scmp.eq.s32.totalorder %s21, 1
    %p86 = por %p84, %p85
    %p88 = scmp.ne.s32.totalorder %s73, %s87
    %p89 = scmp.eq.s32.totalorder %s21, 0
    %p90 = por %p88, %p89
    %s92 = sadd.s32 %s91, 1
    %p95 = scmp.eq.s32.totalorder %s15, 1
    %p96 = scmp.ne.s32.totalorder %s91, %s93
    %p97 = scmp.eq.s32.totalorder %s15, 0
    %p98 = por %p96, %p97
    %p99 = scmp.ne.s32.totalorder %s91, %s93
    %p100 = scmp.eq.s32.totalorder %s20, 1
    %p101 = por %p99, %p100
    %p102 = scmp.ne.s32.totalorder %s93, %s94
    %p103 = scmp.eq.s32.totalorder %s20, 0
    %p104 = por %p102, %p103
    %p105 = scmp.ne.s32.totalorder %s93, %s94
    %p106 = scmp.eq.s32.totalorder %s21, 1
    %p107 = por %p105, %p106
    %p109 = scmp.ne.s32.totalorder %s94, %s108
    %p110 = scmp.eq.s32.totalorder %s21, 0
    %p111 = por %p109, %p110
    %s113 = sadd.s32 %s112, 1
    %p116 = scmp.eq.s32.totalorder %s15, 1
    %p117 = scmp.ne.s32.totalorder %s112, %s114
    %p118 = scmp.eq.s32.totalorder %s15, 0
    %p119 = por %p117, %p118
    %p120 = scmp.ne.s32.totalorder %s112, %s114
    %p121 = scmp.eq.s32.totalorder %s20, 1
    %p122 = por %p120, %p121
    %p123 = scmp.ne.s32.totalorder %s114, %s115
    %p124 = scmp.eq.s32.totalorder %s20, 0
    %p125 = por %p123, %p124
    %p126 = scmp.ne.s32.totalorder %s114, %s115
    %p127 = scmp.eq.s32.totalorder %s21, 1
    %p128 = por %p126, %p127
    %p130 = scmp.ne.s32.totalorder %s115, %s129
    %p131 = scmp.eq.s32.totalorder %s21, 0
    %p132 = por %p130, %p131
    %s134 = sadd.s32 %s133, 1
    %p137 = scmp.eq.s32.totalorder %s15, 1
    %p138 = scmp.ne.s32.totalorder %s133, %s135
    %p139 = scmp.eq.s32.totalorder %s15, 0
    %p140 = por %p138, %p139
    %p141 = scmp.ne.s32.totalorder %s133, %s135
    %p142 = scmp.eq.s32.totalorder %s20, 1
    %p143 = por %p141, %p142
    %p144 = scmp.ne.s32.totalorder %s135, %s136
    %p145 = scmp.eq.s32.totalorder %s20, 0
    %p146 = por %p144, %p145
    %p147 = scmp.ne.s32.totalorder %s135, %s136
    %p148 = scmp.eq.s32.totalorder %s21, 1
    %p149 = por %p147, %p148
    %p151 = scmp.ne.s32.totalorder %s136, %s150
    %p152 = scmp.eq.s32.totalorder %s21, 0
    %p153 = por %p151, %p152
    %s155 = sadd.s32 %s154, 1
    %p158 = scmp.eq.s32.totalorder %s15, 1
    %p159 = scmp.ne.s32.totalorder %s154, %s156
    %p160 = scmp.eq.s32.totalorder %s15, 0
    %p161 = por %p159, %p160
    %p162 = scmp.ne.s32.totalorder %s154, %s156
    %p163 = scmp.eq.s32.totalorder %s20, 1
    %p164 = por %p162, %p163
    %p165 = scmp.ne.s32.totalorder %s156, %s157
    %p166 = scmp.eq.s32.totalorder %s20, 0
    %p167 = por %p165, %p166
    %p168 = scmp.ne.s32.totalorder %s156, %s157
    %p169 = scmp.eq.s32.totalorder %s21, 1
    %p170 = por %p168, %p169
    %p172 = scmp.ne.s32.totalorder %s157, %s171
    %p173 = scmp.eq.s32.totalorder %s21, 0
    %p174 = por %p172, %p173
    %s176 = sadd.s32 %s175, 1
    %p179 = scmp.eq.s32.totalorder %s15, 1
    %p180 = scmp.ne.s32.totalorder %s175, %s177
    %p181 = scmp.eq.s32.totalorder %s15, 0
    %p182 = por %p180, %p181
    %p183 = scmp.ne.s32.totalorder %s175, %s177
    %p184 = scmp.eq.s32.totalorder %s20, 1
    %p185 = por %p183, %p184
    %p186 = scmp.ne.s32.totalorder %s177, %s178
    %p187 = scmp.eq.s32.totalorder %s20, 0
    %p188 = por %p186, %p187
    %p189 = scmp.ne.s32.totalorder %s177, %s178
    %p190 = scmp.eq.s32.totalorder %s21, 1
    %p191 = por %p189, %p190
    %p193 = scmp.ne.s32.totalorder %s178, %s192
    %p194 = scmp.eq.s32.totalorder %s21, 0
    %p195 = por %p193, %p194
    %s196 = ssub.s32 %s15, %s22
    %p197 = scmp.eq.s32.totalorder %s196, 0
    %s199 = sadd.s32 %s198, 1
    %s200 = scalar_select %p197, %s198, %s199
    %p203 = pneg %p197
    %p204 = scmp.eq.s32.totalorder %s15, 1
    %p205 = por %p203, %p204
    %p206 = scmp.ne.s32.totalorder %s198, %s201
    %p207 = scmp.eq.s32.totalorder %s15, 0
    %p208 = por %p206, %p207
    %p209 = scmp.ne.s32.totalorder %s198, %s201
    %p210 = scmp.eq.s32.totalorder %s20, 1
    %p211 = por %p209, %p210
    %p212 = scmp.ne.s32.totalorder %s201, %s202
    %p213 = scmp.eq.s32.totalorder %s20, 0
    %p214 = por %p212, %p213
    %p215 = scmp.ne.s32.totalorder %s201, %s202
    %p216 = scmp.eq.s32.totalorder %s21, 1
    %p217 = por %p215, %p216
    %p219 = scmp.ne.s32.totalorder %s202, %s218
    %p220 = scmp.eq.s32.totalorder %s21, 0
    %p221 = por %p219, %p220
    %p222 = scmp.le.s32.totalorder 1, %s15
    %p223 = scmp.lt.s32.totalorder %s15, 3
    %p224 = pnand %p222, %p223
    %p225 = pneg %p224
    // Predicated region
    $region9: #{model_evolve_forward.1} parent=5 // pred_check
      _
    $region10: #{model_evolve_forward.1} parent=5 // pred_check_branch
      %227 = sbr.rel (%p224) target = $region12
    $region11: #{model_evolve_forward.1} parent=5 // pred_region
      %s228 = ssub.s32 %s15, 1
      // Predicated region
      $region13: #{model_evolve_forward.1} parent=11 // pred_check
        %p229 = pneg %p62
      $region14: #{model_evolve_forward.1} parent=11 // pred_check_branch
        %231 = sbr.rel (%p229) target = $region16
      $region15: #{model_evolve_forward.1} parent=11 // pred_region
        _
      $region16: #{model_evolve_forward.1} parent=11 // pred_fallthru
        _
      // Predicated region
      $region17: #{model_evolve_forward.1} parent=11 // pred_check
        %p232 = pneg %p83
      $region18: #{model_evolve_forward.1} parent=11 // pred_check_branch
        %234 = sbr.rel (%p232) target = $region20
      $region19: #{model_evolve_forward.1} parent=11 // pred_region
        _
      $region20: #{model_evolve_forward.1} parent=11 // pred_fallthru
        _
      // Predicated region
      $region21: #{model_evolve_forward.1} parent=11 // pred_check
        %p235 = pneg %p104
      $region22: #{model_evolve_forward.1} parent=11 // pred_check_branch
        %237 = sbr.rel (%p235) target = $region24
      $region23: #{model_evolve_forward.1} parent=11 // pred_region
        _
      $region24: #{model_evolve_forward.1} parent=11 // pred_fallthru
        _
      // Predicated region
      $region25: #{model_evolve_forward.1} parent=11 // pred_check
        %p238 = pneg %p125
      $region26: #{model_evolve_forward.1} parent=11 // pred_check_branch
        %240 = sbr.rel (%p238) target = $region28
      $region27: #{model_evolve_forward.1} parent=11 // pred_region
        _
      $region28: #{model_evolve_forward.1} parent=11 // pred_fallthru
        _
      // Predicated region
      $region29: #{model_evolve_forward.1} parent=11 // pred_check
        %p241 = pneg %p146
      $region30: #{model_evolve_forward.1} parent=11 // pred_check_branch
        %243 = sbr.rel (%p241) target = $region32
      $region31: #{model_evolve_forward.1} parent=11 // pred_region
        _
      $region32: #{model_evolve_forward.1} parent=11 // pred_fallthru
        _
      // Predicated region
      $region33: #{model_evolve_forward.1} parent=11 // pred_check
        %p244 = pneg %p167
      $region34: #{model_evolve_forward.1} parent=11 // pred_check_branch
        %246 = sbr.rel (%p244) target = $region36
      $region35: #{model_evolve_forward.1} parent=11 // pred_region
        _
      $region36: #{model_evolve_forward.1} parent=11 // pred_fallthru
        _
      // Predicated region
      $region37: #{model_evolve_forward.1} parent=11 // pred_check
        %p247 = pneg %p188
      $region38: #{model_evolve_forward.1} parent=11 // pred_check_branch
        %249 = sbr.rel (%p247) target = $region40
      $region39: #{model_evolve_forward.1} parent=11 // pred_region
        _
      $region40: #{model_evolve_forward.1} parent=11 // pred_fallthru
        _
    $region12: #{model_evolve_forward.1} parent=5 // pred_fallthru
      _
    %p250 = scmp.lt.s32.totalorder %s15, 2
    // Predicated region
    $region41: #{model_evolve_forward.1} parent=5 // pred_check
      %p251 = pneg %p250
    $region42: #{model_evolve_forward.1} parent=5 // pred_check_branch
      %253 = sbr.rel (%p251) target = $region44
    $region43: #{model_evolve_forward.1} parent=5 // pred_region
      // Predicated region
      $region45: #{model_evolve_forward.1} parent=43 // pred_check
        %p254 = pneg %p35
      $region46: #{model_evolve_forward.1} parent=43 // pred_check_branch
        %256 = sbr.rel (%p254) target = $region48
      $region47: #{model_evolve_forward.1} parent=43 // pred_region
        %p257 = scmp.lt.s32.totalorder %s15, 1
        %s258 = scalar_select %p257, %s15, 1
        %s259 = smul.addr %s258, 2
        %s260 = smul.addr %s259, 8
        %s261 = scalar_lea.vmem %s0, %s260
      $region48: #{model_evolve_forward.1} parent=43 // pred_fallthru
        _
    $region44: #{model_evolve_forward.1} parent=5 // pred_fallthru
      _
    %p262 = scmp.le.s32.totalorder 1, %s15
    %p263 = scmp.lt.s32.totalorder %s15, 3
    %p264 = pnand %p262, %p263
    %p265 = pneg %p264
    // Predicated region
    $region49: #{model_evolve_forward.1} parent=5 // pred_check
      _
    $region50: #{model_evolve_forward.1} parent=5 // pred_check_branch
      %267 = sbr.rel (%p264) target = $region52
    $region51: #{model_evolve_forward.1} parent=5 // pred_region
      %s268 = ssub.s32 %s15, 1
      %p269 = scmp.lt.s32.totalorder %s20, 1
      %s270 = scalar_select %p269, %s20, 1
      %s271 = smul.addr %s270, 2
      %s272 = smul.addr %s271, 8
      %s273 = scalar_lea.vmem %s0, %s272
      %p274 = pneg %p41
      %p275 = pneg %p38
      %p276 = pneg %p62
      %p277 = pneg %p59
      %p278 = pneg %p83
      %p279 = pneg %p80
      %p280 = pneg %p104
      %p281 = pneg %p101
      %p282 = pneg %p125
      %p283 = pneg %p122
      %p284 = pneg %p146
      %p285 = pneg %p143
      %p286 = pneg %p167
      %p287 = pneg %p164
      %p288 = pneg %p188
      %p289 = pneg %p185
      %p290 = pneg %p214
      %p291 = pneg %p211
      %p292 = scmp.lt.s32.totalorder %s20, 1
      %s293 = scalar_select %p292, %s20, 1
      %s294 = scalar_lea.vmem %s8, %s293
      %p295 = scmp.lt.s32.totalorder %s20, 1
      %s296 = scalar_select %p295, %s20, 1
      %s297 = smul.addr %s296, 2
      %s298 = smul.addr %s297, 8
      %s299 = scalar_lea.vmem %s0, %s298
      %p300 = scmp.lt.s32.totalorder %s20, 1
      %s301 = scalar_select %p300, %s20, 1
      %s302 = scalar_lea.vmem %s8, %s301
      %304 = vst [vmem:[#allocation2] sm:$0xff] 0.0
      %305 = vst [vmem:[#allocation2 + $0x18] sm:$0xff] 0.0
      %v306 = vld [vmem:[%s299] sm:$0xff]
      %v307 = vld [vmem:[%s299 + $0x8] sm:$0xff]
      %308 = vst [vmem:[#allocation2 + $0x8] sm:$0xff] %v306
      %309 = vst [vmem:[#allocation2 + $0x10] sm:$0xff] %v307
      %v310 = vld [vmem:[%s2] sm:$0xf]
      %v311 = vld [vmem:[%s3] sm:$0xff]
      %v312 = vld [vmem:[#allocation2] sm:$0xff]
      %v313 = vld [vmem:[#allocation2 + $0x8] sm:$0xff]
      %v314 = vld [vmem:[#allocation2 + $0x10] sm:$0xff]
      %v315 = vld [vmem:[%s1] ss:$8 sm:$0x3]
      %v317 = vlaneseq
      %v318 = vshrl.u32 %v317, 7
      %v319 = vsub.s32 0, %v318
      %v320 = vrot.slane %v315, %v319
      %v321 = vlaneseq
      %v322 = vshrl.u32 %v321, 7
      %v323 = vsub.s32 1, %v322
      %v324 = vrot.slane %v315, %v323
      %325 = vrot.lane.b32.xlu0 %v320, 111
      %v326 = vpop.permute.xlu0 %325
      %327 = vrot.lane.b32.xlu0 %v324, 111
      %v328 = vpop.permute.xlu0 %327
      %vm329 = vcmask 908288
      %v330 = vsel %vm329, %v326, %v328
      %v334 = vmul.f32 %v312, %v326
      %v335 = vmul.f32 %v313, %v330
      %v336 = vmul.f32 %v314, %v328
      %s337 = scalar_lea.vmem %s1, 1
      %v338 = vld [vmem:[%s337] ss:$8 sm:$0x3]
      %v340 = vlaneseq
      %v341 = vshrl.u32 %v340, 7
      %v342 = vsub.s32 0, %v341
      %v343 = vrot.slane %v338, %v342
      %v344 = vlaneseq
      %v345 = vshrl.u32 %v344, 7
      %v346 = vsub.s32 1, %v345
      %v347 = vrot.slane %v338, %v346
      %348 = vrot.lane.b32.xlu0 %v343, 112
      %v349 = vpop.permute.xlu0 %348
      %350 = vrot.lane.b32.xlu0 %v347, 112
      %v351 = vpop.permute.xlu0 %350
      %vm352 = vcmask 916480
      %v353 = vsel %vm352, %v349, %v351
      %v357 = vmul.f32 %v312, %v349
      %v358 = vmul.f32 %v313, %v353
      %v359 = vmul.f32 %v314, %v351
      %s360 = scalar_lea.vmem %s1, 2
      %v361 = vld [vmem:[%s360] ss:$8 sm:$0x3]
      %v363 = vlaneseq
      %v364 = vshrl.u32 %v363, 7
      %v365 = vsub.s32 0, %v364
      %v366 = vrot.slane %v361, %v365
      %v367 = vlaneseq
      %v368 = vshrl.u32 %v367, 7
      %v369 = vsub.s32 1, %v368
      %v370 = vrot.slane %v361, %v369
      %371 = vrot.lane.b32.xlu0 %v366, 113
      %v372 = vpop.permute.xlu0 %371
      %373 = vrot.lane.b32.xlu0 %v370, 113
      %v374 = vpop.permute.xlu0 %373
      %vm375 = vcmask 924672
      %v376 = vsel %vm375, %v372, %v374
      %v380 = vmul.f32 %v312, %v372
      %v381 = vmul.f32 %v313, %v376
      %v382 = vmul.f32 %v314, %v374
      %s383 = scalar_lea.vmem %s1, 3
      %v384 = vld [vmem:[%s383] ss:$8 sm:$0x3]
      %v386 = vlaneseq
      %v387 = vshrl.u32 %v386, 7
      %v388 = vsub.s32 0, %v387
      %v389 = vrot.slane %v384, %v388
      %v390 = vlaneseq
      %v391 = vshrl.u32 %v390, 7
      %v392 = vsub.s32 1, %v391
      %v393 = vrot.slane %v384, %v392
      %394 = vrot.lane.b32.xlu0 %v389, 127
      %v395 = vpop.permute.xlu0 %394
      %396 = vrot.lane.b32.xlu0 %v393, 127
      %v397 = vpop.permute.xlu0 %396
      %vm398 = vcmask 1039360
      %v399 = vsel %vm398, %v395, %v397
      %v403 = vmul.f32 %v312, %v395
      %v404 = vmul.f32 %v313, %v399
      %v405 = vmul.f32 %v314, %v397
      %v406 = vld [vmem:[#allocation2 + $0x8] sm:$0xff]
      %v407 = vld [vmem:[#allocation2 + $0x10] sm:$0xff]
      %v408 = vld [vmem:[#allocation2 + $0x18] sm:$0xff]
      %s409 = scalar_lea.vmem %s1, 5
      %v410 = vld [vmem:[%s409] ss:$8 sm:$0x3]
      %v412 = vlaneseq
      %v413 = vshrl.u32 %v412, 7
      %v414 = vsub.s32 0, %v413
      %v415 = vrot.slane %v410, %v414
      %v416 = vlaneseq
      %v417 = vshrl.u32 %v416, 7
      %v418 = vsub.s32 1, %v417
      %v419 = vrot.slane %v410, %v418
      %420 = vrot.lane.b32.xlu0 %v415, 1
      %v421 = vpop.permute.xlu0 %420
      %422 = vrot.lane.b32.xlu0 %v419, 1
      %v423 = vpop.permute.xlu0 %422
      %vm424 = vcmask 7168
      %v425 = vsel %vm424, %v421, %v423
      %v429 = vmul.f32 %v406, %v421
      %v430 = vmul.f32 %v407, %v425
      %v431 = vmul.f32 %v408, %v423
      %s432 = scalar_lea.vmem %s1, 6
      %v433 = vld [vmem:[%s432] ss:$8 sm:$0x3]
      %v435 = vlaneseq
      %v436 = vshrl.u32 %v435, 7
      %v437 = vsub.s32 0, %v436
      %v438 = vrot.slane %v433, %v437
      %v439 = vlaneseq
      %v440 = vshrl.u32 %v439, 7
      %v441 = vsub.s32 1, %v440
      %v442 = vrot.slane %v433, %v441
      %443 = vrot.lane.b32.xlu0 %v438, 15
      %v444 = vpop.permute.xlu0 %443
      %445 = vrot.lane.b32.xlu0 %v442, 15
      %v446 = vpop.permute.xlu0 %445
      %vm447 = vcmask 121856
      %v448 = vsel %vm447, %v444, %v446
      %v452 = vmul.f32 %v406, %v444
      %v453 = vmul.f32 %v407, %v448
      %v454 = vmul.f32 %v408, %v446
      %s455 = scalar_lea.vmem %s1, 7
      %v456 = vld [vmem:[%s455] ss:$8 sm:$0x3]
      %v458 = vlaneseq
      %v459 = vshrl.u32 %v458, 7
      %v460 = vsub.s32 0, %v459
      %v461 = vrot.slane %v456, %v460
      %v462 = vlaneseq
      %v463 = vshrl.u32 %v462, 7
      %v464 = vsub.s32 1, %v463
      %v465 = vrot.slane %v456, %v464
      %466 = vrot.lane.b32.xlu0 %v461, 16
      %v467 = vpop.permute.xlu0 %466
      %468 = vrot.lane.b32.xlu0 %v465, 16
      %v469 = vpop.permute.xlu0 %468
      %vm470 = vcmask 130048
      %v471 = vsel %vm470, %v467, %v469
      %v475 = vmul.f32 %v406, %v467
      %v476 = vmul.f32 %v407, %v471
      %v477 = vmul.f32 %v408, %v469
      %s478 = scalar_lea.vmem %s1, 16
      %v479 = vld [vmem:[%s478] ss:$8 sm:$0x3]
      %v481 = vlaneseq
      %v482 = vshrl.u32 %v481, 7
      %v483 = vsub.s32 0, %v482
      %v484 = vrot.slane %v479, %v483
      %v485 = vlaneseq
      %v486 = vshrl.u32 %v485, 7
      %v487 = vsub.s32 1, %v486
      %v488 = vrot.slane %v479, %v487
      %489 = vrot.lane.b32.xlu0 %v484, 17
      %v490 = vpop.permute.xlu0 %489
      %491 = vrot.lane.b32.xlu0 %v488, 17
      %v492 = vpop.permute.xlu0 %491
      %vm493 = vcmask 138240
      %v494 = vsel %vm493, %v490, %v492
      %v498 = vmul.f32 %v406, %v490
      %v499 = vmul.f32 %v407, %v494
      %v500 = vmul.f32 %v408, %v492
      %504 = vrot.lane.b32.xlu0 %v357, 127
      %v505 = vpop.permute.xlu0 %504
      %506 = vrot.lane.b32.xlu0 %v358, 127
      %v507 = vpop.permute.xlu0 %506
      %508 = vrot.lane.b32.xlu0 %v359, 127
      %v509 = vpop.permute.xlu0 %508
      %v510 = vsel %vm398, %v505, %v507
      %v511 = vsel %vm398, %v507, %v509
      %518 = vrot.lane.b32.xlu0 %v380, 126
      %v519 = vpop.permute.xlu0 %518
      %520 = vrot.lane.b32.xlu0 %v381, 126
      %v521 = vpop.permute.xlu0 %520
      %522 = vrot.lane.b32.xlu0 %v382, 126
      %v523 = vpop.permute.xlu0 %522
      %vm524 = vcmask 1031168
      %v525 = vsel %vm524, %v519, %v521
      %v526 = vsel %vm524, %v521, %v523
      %533 = vrot.lane.b32.xlu0 %v403, 112
      %v534 = vpop.permute.xlu0 %533
      %535 = vrot.lane.b32.xlu0 %v404, 112
      %v536 = vpop.permute.xlu0 %535
      %537 = vrot.lane.b32.xlu0 %v405, 112
      %v538 = vpop.permute.xlu0 %537
      %v539 = vsel %vm352, %v534, %v536
      %v540 = vsel %vm352, %v536, %v538
      %546 = vrot.lane.b32.xlu0 %v313, 111
      %v547 = vpop.permute.xlu0 %546
      %548 = vrot.lane.b32.xlu0 %v314, 111
      %v549 = vpop.permute.xlu0 %548
      %v550 = vsel %vm329, %v547, %v549
      %557 = vrot.lane.b32.xlu0 %v429, 110
      %v558 = vpop.permute.xlu0 %557
      %559 = vrot.lane.b32.xlu0 %v430, 110
      %v560 = vpop.permute.xlu0 %559
      %561 = vrot.lane.b32.xlu0 %v431, 110
      %v562 = vpop.permute.xlu0 %561
      %vm563 = vcmask 900096
      %v564 = vsel %vm563, %v558, %v560
      %v565 = vsel %vm563, %v560, %v562
      %572 = vrot.lane.b32.xlu0 %v452, 96
      %v573 = vpop.permute.xlu0 %572
      %574 = vrot.lane.b32.xlu0 %v453, 96
      %v575 = vpop.permute.xlu0 %574
      %576 = vrot.lane.b32.xlu0 %v454, 96
      %v577 = vpop.permute.xlu0 %576
      %vm578 = vcmask 785408
      %v579 = vsel %vm578, %v573, %v575
      %v580 = vsel %vm578, %v575, %v577
      %587 = vrot.lane.b32.xlu0 %v475, 95
      %v588 = vpop.permute.xlu0 %587
      %589 = vrot.lane.b32.xlu0 %v476, 95
      %v590 = vpop.permute.xlu0 %589
      %591 = vrot.lane.b32.xlu0 %v477, 95
      %v592 = vpop.permute.xlu0 %591
      %vm593 = vcmask 777216
      %v594 = vsel %vm593, %v588, %v590
      %v595 = vsel %vm593, %v590, %v592
      %602 = vrot.lane.b32.xlu0 %v498, 94
      %v603 = vpop.permute.xlu0 %602
      %604 = vrot.lane.b32.xlu0 %v499, 94
      %v605 = vpop.permute.xlu0 %604
      %606 = vrot.lane.b32.xlu0 %v500, 94
      %v607 = vpop.permute.xlu0 %606
      %vm608 = vcmask 769024
      %v609 = vsel %vm608, %v603, %v605
      %v610 = vsel %vm608, %v605, %v607
      %v614 = vpack.c.bf16 %v510, %v334
      %v615 = vpack.c.bf16 %v511, %v335
      %v616 = vpack.c.bf16 %v509, %v336
      %v617 = vpack.c.bf16 %v539, %v525
      %v618 = vpack.c.bf16 %v540, %v526
      %v619 = vpack.c.bf16 %v538, %v523
      %v620 = vpack.c.bf16 %v558, %v547
      %v621 = vpack.c.bf16 %v564, %v550
      %v622 = vpack.c.bf16 %v565, %v549
      %v623 = vpack.c.bf16 %v588, %v573
      %v624 = vpack.c.bf16 %v594, %v579
      %v625 = vpack.c.bf16 %v595, %v580
      %v626 = vpack.c.bf16 %v603, %v603
      %v627 = vpack.c.bf16 %v609, %v609
      %v628 = vpack.c.bf16 %v610, %v610
      %630 = vset.pattern.permute.xlu0 0
      %631 = vperm.xlu0 %630, %v311
      %v632 = vpop.permute.xlu0 %631
      %649 = vrot.lane.b32.xlu0 %v614, 17
      %v650 = vpop.permute.xlu0 %649
      %651 = vrot.lane.b32.xlu0 %v615, 17
      %v652 = vpop.permute.xlu0 %651
      %653 = vrot.lane.b32.xlu0 %v616, 17
      %v654 = vpop.permute.xlu0 %653
      %655 = vrot.lane.b32.xlu0 %v617, 17
      %v656 = vpop.permute.xlu0 %655
      %657 = vrot.lane.b32.xlu0 %v618, 17
      %v658 = vpop.permute.xlu0 %657
      %659 = vrot.lane.b32.xlu0 %v619, 17
      %v660 = vpop.permute.xlu0 %659
      %661 = vrot.lane.b32.xlu0 %v620, 17
      %v662 = vpop.permute.xlu0 %661
      %663 = vrot.lane.b32.xlu0 %v621, 17
      %v664 = vpop.permute.xlu0 %663
      %665 = vrot.lane.b32.xlu0 %v622, 17
      %v666 = vpop.permute.xlu0 %665
      %667 = vrot.lane.b32.xlu0 %v623, 17
      %v668 = vpop.permute.xlu0 %667
      %669 = vrot.lane.b32.xlu0 %v624, 17
      %v670 = vpop.permute.xlu0 %669
      %671 = vrot.lane.b32.xlu0 %v625, 17
      %v672 = vpop.permute.xlu0 %671
      %673 = vrot.lane.b32.xlu0 %v626, 17
      %v674 = vpop.permute.xlu0 %673
      %675 = vrot.lane.b32.xlu0 %v627, 17
      %v676 = vpop.permute.xlu0 %675
      %677 = vrot.lane.b32.xlu0 %v628, 17
      %v678 = vpop.permute.xlu0 %677
      %vm679 = vcmask 138240
      %v680 = vsel %vm679, %v650, %v652
      %v681 = vsel %vm679, %v652, %v654
      %v682 = vsel %vm679, %v656, %v658
      %v683 = vsel %vm679, %v658, %v660
      %v684 = vsel %vm679, %v662, %v664
      %v685 = vsel %vm679, %v664, %v666
      %v686 = vsel %vm679, %v668, %v670
      %v687 = vsel %vm679, %v670, %v672
      %v688 = vsel %vm679, %v674, %v676
      %v689 = vsel %vm679, %v676, %v678
      %vm698 = vcmask 588800
      %v700 = vsel %vm698, %v310, 0
      %vm702 = vcmask 1043456
      %v704 = vsel %vm702, %v688, 0
      %v707 = vsel %vm702, %v689, 0
      %709 = vmatprep.subr.bf16.mxu0 0
      %710 = vmatpush1.bf16.msra.mxu0 0
      %711 = vmatprep.subr.bf16.mxu0 0
      %712 = vmatpush1.bf16.msra.mxu0 0
      %713 = vmatprep.subr.bf16.mxu0 0
      %714 = vmatpush1.bf16.msra.mxu0 0
      %715 = vmatprep.subr.bf16.mxu0 %v707
      %716 = vmatpush1.bf16.msra.mxu0 %v704
      %717 = vmatprep.subr.bf16.mxu0 %v687
      %718 = vmatpush1.bf16.msra.mxu0 %v686
      %719 = vmatprep.subr.bf16.mxu0 %v685
      %720 = vmatpush1.bf16.msra.mxu0 %v684
      %721 = vmatprep.subr.bf16.mxu0 %v683
      %722 = vmatpush1.bf16.msra.mxu0 %v682
      %723 = vmatprep.subr.bf16.mxu0 %v681
      %724 = vmatpush1.bf16.msra.mxu0 %v680
      %725 = vmatprep.subr.bf16.mxu0 0
      %726 = vmatpush2.bf16.msra.mxu0 0
      %727 = vmatprep.subr.bf16.mxu0 0
      %728 = vmatpush2.bf16.msra.mxu0 0
      %729 = vmatprep.subr.bf16.mxu0 0
      %730 = vmatpush2.bf16.msra.mxu0 0
      %731 = vmatprep.subr.bf16.mxu0 0
      %732 = vmatpush2.bf16.msra.mxu0 0
      %733 = vmatprep.subr.bf16.mxu0 0
      %734 = vmatpush2.bf16.msra.mxu0 0
      %735 = vmatprep.subr.bf16.mxu0 0
      %736 = vmatpush2.bf16.msra.mxu0 0
      %737 = vmatprep.subr.bf16.mxu0 0
      %738 = vmatpush2.bf16.msra.mxu0 0
      %739 = vmatprep.subr.bf16.mxu0 0
      %740 = vmatpush2.bf16.msra.mxu0 0
      %741 = vmatprep.mubr.bf16.mxu0 0
      %742 = vmatmul.mubr.bf16.gmra.mxu0 %v700
      %v743 = vpop.f32.mrf.mxu0
      %v744 = vadd.f32 %v632, %v743
      %v745 = vpop.f32.mrf.mxu0
      %v746 = vadd.f32 %v632, %v745
      %v747 = vpop.f32.mrf.mxu0
      %v748 = vpop.f32.mrf.mxu0
      %749 = vdwg.mxu0
      %vm750 = vcmp.gt.f32.partialorder %v744, 0.0
      %vm751 = vcmp.gt.f32.partialorder %v746, 0.0
      %v752 = vmul.f32 %v744, 0.2
      %v753 = vmul.f32 %v746, 0.2
      %v754 = vsel %vm750, %v744, %v752
      %v755 = vsel %vm751, %v746, %v753
      %756 = vst [vmem:[#allocation2 + $0x8] sm:$0xff] %v754
      %757 = vst [vmem:[#allocation2 + $0x10] sm:$0xff] %v755
      %v758 = vld [vmem:[%s4] sm:$0xf]
      %v759 = vld [vmem:[%s4 + $0x4] sm:$0xf]
      %v760 = vld [vmem:[%s5] sm:$0xff]
      %v761 = vld [vmem:[%s5 + $0x8] sm:$0xff]
      %v762 = vld [vmem:[#allocation2] sm:$0xff]
      %v763 = vld [vmem:[#allocation2 + $0x8] sm:$0xff]
      %v764 = vld [vmem:[#allocation2 + $0x10] sm:$0xff]
      %v765 = vld [vmem:[%s1] ss:$8 sm:$0x3]
      %v767 = vlaneseq
      %v768 = vshrl.u32 %v767, 7
      %v769 = vsub.s32 0, %v768
      %v770 = vrot.slane %v765, %v769
      %v771 = vlaneseq
      %v772 = vshrl.u32 %v771, 7
      %v773 = vsub.s32 1, %v772
      %v774 = vrot.slane %v765, %v773
      %775 = vrot.lane.b32.xlu0 %v770, 111
      %v776 = vpop.permute.xlu0 %775
      %777 = vrot.lane.b32.xlu0 %v774, 111
      %v778 = vpop.permute.xlu0 %777
      %v779 = vsel %vm329, %v776, %v778
      %v783 = vmul.f32 %v762, %v776
      %v784 = vmul.f32 %v763, %v779
      %v785 = vmul.f32 %v764, %v778
      %v786 = vld [vmem:[%s337] ss:$8 sm:$0x3]
      %v788 = vlaneseq
      %v789 = vshrl.u32 %v788, 7
      %v790 = vsub.s32 0, %v789
      %v791 = vrot.slane %v786, %v790
      %v792 = vlaneseq
      %v793 = vshrl.u32 %v792, 7
      %v794 = vsub.s32 1, %v793
      %v795 = vrot.slane %v786, %v794
      %796 = vrot.lane.b32.xlu0 %v791, 112
      %v797 = vpop.permute.xlu0 %796
      %798 = vrot.lane.b32.xlu0 %v795, 112
      %v799 = vpop.permute.xlu0 %798
      %v800 = vsel %vm352, %v797, %v799
      %v804 = vmul.f32 %v762, %v797
      %v805 = vmul.f32 %v763, %v800
      %v806 = vmul.f32 %v764, %v799
      %v807 = vld [vmem:[%s360] ss:$8 sm:$0x3]
      %v809 = vlaneseq
      %v810 = vshrl.u32 %v809, 7
      %v811 = vsub.s32 0, %v810
      %v812 = vrot.slane %v807, %v811
      %v813 = vlaneseq
      %v814 = vshrl.u32 %v813, 7
      %v815 = vsub.s32 1, %v814
      %v816 = vrot.slane %v807, %v815
      %817 = vrot.lane.b32.xlu0 %v812, 113
      %v818 = vpop.permute.xlu0 %817
      %819 = vrot.lane.b32.xlu0 %v816, 113
      %v820 = vpop.permute.xlu0 %819
      %v821 = vsel %vm375, %v818, %v820
      %v825 = vmul.f32 %v762, %v818
      %v826 = vmul.f32 %v763, %v821
      %v827 = vmul.f32 %v764, %v820
      %v828 = vld [vmem:[%s383] ss:$8 sm:$0x3]
      %v830 = vlaneseq
      %v831 = vshrl.u32 %v830, 7
      %v832 = vsub.s32 0, %v831
      %v833 = vrot.slane %v828, %v832
      %v834 = vlaneseq
      %v835 = vshrl.u32 %v834, 7
      %v836 = vsub.s32 1, %v835
      %v837 = vrot.slane %v828, %v836
      %838 = vrot.lane.b32.xlu0 %v833, 127
      %v839 = vpop.permute.xlu0 %838
      %840 = vrot.lane.b32.xlu0 %v837, 127
      %v841 = vpop.permute.xlu0 %840
      %v842 = vsel %vm398, %v839, %v841
      %v846 = vmul.f32 %v762, %v839
      %v847 = vmul.f32 %v763, %v842
      %v848 = vmul.f32 %v764, %v841
      %v849 = vld [vmem:[#allocation2 + $0x8] sm:$0xff]
      %v850 = vld [vmem:[#allocation2 + $0x10] sm:$0xff]
      %v851 = vld [vmem:[#allocation2 + $0x18] sm:$0xff]
      %v852 = vld [vmem:[%s409] ss:$8 sm:$0x3]
      %v854 = vlaneseq
      %v855 = vshrl.u32 %v854, 7
      %v856 = vsub.s32 0, %v855
      %v857 = vrot.slane %v852, %v856
      %v858 = vlaneseq
      %v859 = vshrl.u32 %v858, 7
      %v860 = vsub.s32 1, %v859
      %v861 = vrot.slane %v852, %v860
      %862 = vrot.lane.b32.xlu0 %v857, 1
      %v863 = vpop.permute.xlu0 %862
      %864 = vrot.lane.b32.xlu0 %v861, 1
      %v865 = vpop.permute.xlu0 %864
      %v866 = vsel %vm424, %v863, %v865
      %v870 = vmul.f32 %v849, %v863
      %v871 = vmul.f32 %v850, %v866
      %v872 = vmul.f32 %v851, %v865
      %v873 = vld [vmem:[%s432] ss:$8 sm:$0x3]
      %v875 = vlaneseq
      %v876 = vshrl.u32 %v875, 7
      %v877 = vsub.s32 0, %v876
      %v878 = vrot.slane %v873, %v877
      %v879 = vlaneseq
      %v880 = vshrl.u32 %v879, 7
      %v881 = vsub.s32 1, %v880
      %v882 = vrot.slane %v873, %v881
      %883 = vrot.lane.b32.xlu0 %v878, 15
      %v884 = vpop.permute.xlu0 %883
      %885 = vrot.lane.b32.xlu0 %v882, 15
      %v886 = vpop.permute.xlu0 %885
      %v887 = vsel %vm447, %v884, %v886
      %v891 = vmul.f32 %v849, %v884
      %v892 = vmul.f32 %v850, %v887
      %v893 = vmul.f32 %v851, %v886
      %v894 = vld [vmem:[%s455] ss:$8 sm:$0x3]
      %v896 = vlaneseq
      %v897 = vshrl.u32 %v896, 7
      %v898 = vsub.s32 0, %v897
      %v899 = vrot.slane %v894, %v898
      %v900 = vlaneseq
      %v901 = vshrl.u32 %v900, 7
      %v902 = vsub.s32 1, %v901
      %v903 = vrot.slane %v894, %v902
      %904 = vrot.lane.b32.xlu0 %v899, 16
      %v905 = vpop.permute.xlu0 %904
      %906 = vrot.lane.b32.xlu0 %v903, 16
      %v907 = vpop.permute.xlu0 %906
      %v908 = vsel %vm470, %v905, %v907
      %v912 = vmul.f32 %v849, %v905
      %v913 = vmul.f32 %v850, %v908
      %v914 = vmul.f32 %v851, %v907
      %v915 = vld [vmem:[%s478] ss:$8 sm:$0x3]
      %v917 = vlaneseq
      %v918 = vshrl.u32 %v917, 7
      %v919 = vsub.s32 0, %v918
      %v920 = vrot.slane %v915, %v919
      %v921 = vlaneseq
      %v922 = vshrl.u32 %v921, 7
      %v923 = vsub.s32 1, %v922
      %v924 = vrot.slane %v915, %v923
      %925 = vrot.lane.b32.xlu0 %v920, 17
      %v926 = vpop.permute.xlu0 %925
      %927 = vrot.lane.b32.xlu0 %v924, 17
      %v928 = vpop.permute.xlu0 %927
      %v929 = vsel %vm493, %v926, %v928
      %v933 = vmul.f32 %v849, %v926
      %v934 = vmul.f32 %v850, %v929
      %v935 = vmul.f32 %v851, %v928
      %939 = vrot.lane.b32.xlu0 %v804, 127
      %v940 = vpop.permute.xlu0 %939
      %941 = vrot.lane.b32.xlu0 %v805, 127
      %v942 = vpop.permute.xlu0 %941
      %943 = vrot.lane.b32.xlu0 %v806, 127
      %v944 = vpop.permute.xlu0 %943
      %v945 = vsel %vm398, %v940, %v942
      %v946 = vsel %vm398, %v942, %v944
      %953 = vrot.lane.b32.xlu0 %v825, 126
      %v954 = vpop.permute.xlu0 %953
      %955 = vrot.lane.b32.xlu0 %v826, 126
      %v956 = vpop.permute.xlu0 %955
      %957 = vrot.lane.b32.xlu0 %v827, 126
      %v958 = vpop.permute.xlu0 %957
      %v959 = vsel %vm524, %v954, %v956
      %v960 = vsel %vm524, %v956, %v958
      %967 = vrot.lane.b32.xlu0 %v846, 112
      %v968 = vpop.permute.xlu0 %967
      %969 = vrot.lane.b32.xlu0 %v847, 112
      %v970 = vpop.permute.xlu0 %969
      %971 = vrot.lane.b32.xlu0 %v848, 112
      %v972 = vpop.permute.xlu0 %971
      %v973 = vsel %vm352, %v968, %v970
      %v974 = vsel %vm352, %v970, %v972
      %980 = vrot.lane.b32.xlu0 %v763, 111
      %v981 = vpop.permute.xlu0 %980
      %982 = vrot.lane.b32.xlu0 %v764, 111
      %v983 = vpop.permute.xlu0 %982
      %v984 = vsel %vm329, %v981, %v983
      %991 = vrot.lane.b32.xlu0 %v870, 110
      %v992 = vpop.permute.xlu0 %991
      %993 = vrot.lane.b32.xlu0 %v871, 110
      %v994 = vpop.permute.xlu0 %993
      %995 = vrot.lane.b32.xlu0 %v872, 110
      %v996 = vpop.permute.xlu0 %995
      %v997 = vsel %vm563, %v992, %v994
      %v998 = vsel %vm563, %v994, %v996
      %1005 = vrot.lane.b32.xlu0 %v891, 96
      %v1006 = vpop.permute.xlu0 %1005
      %1007 = vrot.lane.b32.xlu0 %v892, 96
      %v1008 = vpop.permute.xlu0 %1007
      %1009 = vrot.lane.b32.xlu0 %v893, 96
      %v1010 = vpop.permute.xlu0 %1009
      %v1011 = vsel %vm578, %v1006, %v1008
      %v1012 = vsel %vm578, %v1008, %v1010
      %1019 = vrot.lane.b32.xlu0 %v912, 95
      %v1020 = vpop.permute.xlu0 %1019
      %1021 = vrot.lane.b32.xlu0 %v913, 95
      %v1022 = vpop.permute.xlu0 %1021
      %1023 = vrot.lane.b32.xlu0 %v914, 95
      %v1024 = vpop.permute.xlu0 %1023
      %v1025 = vsel %vm593, %v1020, %v1022
      %v1026 = vsel %vm593, %v1022, %v1024
      %1033 = vrot.lane.b32.xlu0 %v933, 94
      %v1034 = vpop.permute.xlu0 %1033
      %1035 = vrot.lane.b32.xlu0 %v934, 94
      %v1036 = vpop.permute.xlu0 %1035
      %1037 = vrot.lane.b32.xlu0 %v935, 94
      %v1038 = vpop.permute.xlu0 %1037
      %v1039 = vsel %vm608, %v1034, %v1036
      %v1040 = vsel %vm608, %v1036, %v1038
      %v1044 = vpack.c.bf16 %v945, %v783
      %v1045 = vpack.c.bf16 %v946, %v784
      %v1046 = vpack.c.bf16 %v944, %v785
      %v1047 = vpack.c.bf16 %v973, %v959
      %v1048 = vpack.c.bf16 %v974, %v960
      %v1049 = vpack.c.bf16 %v972, %v958
      %v1050 = vpack.c.bf16 %v992, %v981
      %v1051 = vpack.c.bf16 %v997, %v984
      %v1052 = vpack.c.bf16 %v998, %v983
      %v1053 = vpack.c.bf16 %v1020, %v1006
      %v1054 = vpack.c.bf16 %v1025, %v1011
      %v1055 = vpack.c.bf16 %v1026, %v1012
      %v1056 = vpack.c.bf16 %v1034, %v1034
      %v1057 = vpack.c.bf16 %v1039, %v1039
      %v1058 = vpack.c.bf16 %v1040, %v1040
      %1060 = vset.pattern.permute.xlu0 0
      %1061 = vperm.xlu0 %1060, %v760
      %v1062 = vpop.permute.xlu0 %1061
      %1065 = vset.pattern.permute.xlu0 0
      %1066 = vperm.xlu0 %1065, %v761
      %v1067 = vpop.permute.xlu0 %1066
      %v1071 = vunpack.c.l.b16 %v758
      %v1072 = vunpack.c.l.b16 %v759
      %v1073 = vpack.c.b16 %v1072, %v1071
      %1089 = vrot.lane.b32.xlu0 %v1044, 17
      %v1090 = vpop.permute.xlu0 %1089
      %1091 = vrot.lane.b32.xlu0 %v1045, 17
      %v1092 = vpop.permute.xlu0 %1091
      %1093 = vrot.lane.b32.xlu0 %v1046, 17
      %v1094 = vpop.permute.xlu0 %1093
      %1095 = vrot.lane.b32.xlu0 %v1047, 17
      %v1096 = vpop.permute.xlu0 %1095
      %1097 = vrot.lane.b32.xlu0 %v1048, 17
      %v1098 = vpop.permute.xlu0 %1097
      %1099 = vrot.lane.b32.xlu0 %v1049, 17
      %v1100 = vpop.permute.xlu0 %1099
      %1101 = vrot.lane.b32.xlu0 %v1050, 17
      %v1102 = vpop.permute.xlu0 %1101
      %1103 = vrot.lane.b32.xlu0 %v1051, 17
      %v1104 = vpop.permute.xlu0 %1103
      %1105 = vrot.lane.b32.xlu0 %v1052, 17
      %v1106 = vpop.permute.xlu0 %1105
      %1107 = vrot.lane.b32.xlu0 %v1053, 17
      %v1108 = vpop.permute.xlu0 %1107
      %1109 = vrot.lane.b32.xlu0 %v1054, 17
      %v1110 = vpop.permute.xlu0 %1109
      %1111 = vrot.lane.b32.xlu0 %v1055, 17
      %v1112 = vpop.permute.xlu0 %1111
      %1113 = vrot.lane.b32.xlu0 %v1056, 17
      %v1114 = vpop.permute.xlu0 %1113
      %1115 = vrot.lane.b32.xlu0 %v1057, 17
      %v1116 = vpop.permute.xlu0 %1115
      %1117 = vrot.lane.b32.xlu0 %v1058, 17
      %v1118 = vpop.permute.xlu0 %1117
      %v1119 = vsel %vm679, %v1090, %v1092
      %v1120 = vsel %vm679, %v1092, %v1094
      %v1121 = vsel %vm679, %v1096, %v1098
      %v1122 = vsel %vm679, %v1098, %v1100
      %v1123 = vsel %vm679, %v1102, %v1104
      %v1124 = vsel %vm679, %v1104, %v1106
      %v1125 = vsel %vm679, %v1108, %v1110
      %v1126 = vsel %vm679, %v1110, %v1112
      %v1127 = vsel %vm679, %v1114, %v1116
      %v1128 = vsel %vm679, %v1116, %v1118
      %v1138 = vsel %vm698, %v1073, 0
      %v1141 = vsel %vm702, %v1127, 0
      %v1144 = vsel %vm702, %v1128, 0
      %1146 = vmatprep.subr.bf16.mxu0 0
      %1147 = vmatpush1.bf16.msra.mxu0 0
      %1148 = vmatprep.subr.bf16.mxu0 0
      %1149 = vmatpush1.bf16.msra.mxu0 0
      %1150 = vmatprep.subr.bf16.mxu0 0
      %1151 = vmatpush1.bf16.msra.mxu0 0
      %1152 = vmatprep.subr.bf16.mxu0 %v1144
      %1153 = vmatpush1.bf16.msra.mxu0 %v1141
      %1154 = vmatprep.subr.bf16.mxu0 %v1126
      %1155 = vmatpush1.bf16.msra.mxu0 %v1125
      %1156 = vmatprep.subr.bf16.mxu0 %v1124
      %1157 = vmatpush1.bf16.msra.mxu0 %v1123
      %1158 = vmatprep.subr.bf16.mxu0 %v1122
      %1159 = vmatpush1.bf16.msra.mxu0 %v1121
      %1160 = vmatprep.subr.bf16.mxu0 %v1120
      %1161 = vmatpush1.bf16.msra.mxu0 %v1119
      %1162 = vmatprep.subr.bf16.mxu0 0
      %1163 = vmatpush2.bf16.msra.mxu0 0
      %1164 = vmatprep.subr.bf16.mxu0 0
      %1165 = vmatpush2.bf16.msra.mxu0 0
      %1166 = vmatprep.subr.bf16.mxu0 0
      %1167 = vmatpush2.bf16.msra.mxu0 0
      %1168 = vmatprep.subr.bf16.mxu0 0
      %1169 = vmatpush2.bf16.msra.mxu0 0
      %1170 = vmatprep.subr.bf16.mxu0 0
      %1171 = vmatpush2.bf16.msra.mxu0 0
      %1172 = vmatprep.subr.bf16.mxu0 0
      %1173 = vmatpush2.bf16.msra.mxu0 0
      %1174 = vmatprep.subr.bf16.mxu0 0
      %1175 = vmatpush2.bf16.msra.mxu0 0
      %1176 = vmatprep.subr.bf16.mxu0 0
      %1177 = vmatpush2.bf16.msra.mxu0 0
      %1178 = vmatprep.mubr.bf16.mxu0 0
      %1179 = vmatmul.mubr.bf16.gmra.mxu0 %v1138
      %v1180 = vpop.f32.mrf.mxu0
      %v1181 = vadd.f32 %v1062, %v1180
      %v1182 = vpop.f32.mrf.mxu0
      %v1183 = vadd.f32 %v1062, %v1182
      %v1184 = vpop.f32.mrf.mxu0
      %v1185 = vadd.f32 %v1067, %v1184
      %v1186 = vpop.f32.mrf.mxu0
      %v1187 = vadd.f32 %v1067, %v1186
      %1188 = vdwg.mxu0
      %vm1189 = vcmp.gt.f32.partialorder %v1181, 0.0
      %vm1190 = vcmp.gt.f32.partialorder %v1183, 0.0
      %vm1191 = vcmp.gt.f32.partialorder %v1185, 0.0
      %vm1192 = vcmp.gt.f32.partialorder %v1187, 0.0
      %v1193 = vmul.f32 %v1181, 0.2
      %v1194 = vmul.f32 %v1183, 0.2
      %v1195 = vmul.f32 %v1185, 0.2
      %v1196 = vmul.f32 %v1187, 0.2
      %v1197 = vsel %vm1189, %v1181, %v1193
      %v1198 = vsel %vm1190, %v1183, %v1194
      %v1199 = vsel %vm1191, %v1185, %v1195
      %v1200 = vsel %vm1192, %v1187, %v1196
      %v1201 = vld [vmem:[%s6] sm:$0xff]
      %v1202 = vld [vmem:[%s6 + $0x8] sm:$0xff]
      %v1203 = vld [vmem:[%s6 + $0x10] sm:$0xff]
      %v1204 = vld [vmem:[%s6 + $0x18] sm:$0xff]
      %v1205 = vmul.f32 %v1197, %v1201
      %v1206 = vmul.f32 %v1198, %v1202
      %v1207 = vmul.f32 %v1199, %v1203
      %v1208 = vmul.f32 %v1200, %v1204
      %v1209 = vadd.f32 %v1205, %v1207
      %v1210 = vrot.slane %v1209, 4
      %v1211 = vadd.f32 %v1209, %v1210
      %v1212 = vrot.slane %v1211, 2
      %v1213 = vadd.f32 %v1211, %v1212
      %v1214 = vrot.slane %v1213, 1
      %v1215 = vadd.f32 %v1213, %v1214
      %v1216 = vadd.f32 %v1206, %v1208
      %v1217 = vrot.slane %v1216, 4
      %v1218 = vadd.f32 %v1216, %v1217
      %v1219 = vrot.slane %v1218, 2
      %v1220 = vadd.f32 %v1218, %v1219
      %v1221 = vrot.slane %v1220, 1
      %v1222 = vadd.f32 %v1220, %v1221
      %v1223 = vadd.f32 %v1215, %v1222
      %1224 = vadd.xlane.f32.xlu0 %v1223
      %v1225 = vpop.xlane.xlu0 %1224
      %s1226 = sld [smem:[#allocation3]]
      %v1227 = vstv %s1226
      %v1228 = vadd.f32 %v1225, %v1227
      %1229 = vst [vmem:[%s302] sm:$0x1] %v1228
      %p1230 = scmp.lt.s32.totalorder %s20, 1
      %s1231 = scalar_select %p1230, %s20, 1
      %s1232 = scalar_lea.vmem %s8, %s1231
      // Predicated region
      $region53: #{model_evolve_forward.1} parent=51 // pred_check
        %p1233 = pneg %p211
      $region54: #{model_evolve_forward.1} parent=51 // pred_check_branch
        %1235 = sbr.rel (%p1233) target = $region56
      $region55: #{model_evolve_forward.1} parent=51 // pred_region
        _
      $region56: #{model_evolve_forward.1} parent=51 // pred_fallthru
        _
    $region52: #{model_evolve_forward.1} parent=5 // pred_fallthru
      _
    %p1236 = scmp.le.s32.totalorder 2, %s15
    // Predicated region
    $region57: #{model_evolve_forward.1} parent=5 // pred_check
      %p1237 = pneg %p1236
    $region58: #{model_evolve_forward.1} parent=5 // pred_check_branch
      %1239 = sbr.rel (%p1237) target = $region60
    $region59: #{model_evolve_forward.1} parent=5 // pred_region
      %s1240 = ssub.s32 %s15, 2
      // Predicated region
      $region61: #{model_evolve_forward.1} parent=59 // pred_check
        %p1241 = pneg %p217
      $region62: #{model_evolve_forward.1} parent=59 // pred_check_branch
        %1243 = sbr.rel (%p1241) target = $region64
      $region63: #{model_evolve_forward.1} parent=59 // pred_region
        %p1244 = scmp.lt.s32.totalorder %s21, 1
        %s1245 = scalar_select %p1244, %s21, 1
        %s1246 = scalar_lea.vmem %s8, %s1245
      $region64: #{model_evolve_forward.1} parent=59 // pred_fallthru
        _
    $region60: #{model_evolve_forward.1} parent=5 // pred_fallthru
      _
  $region6: #{model_evolve_forward.1} parent=0 // loop_footer
    %s19 = sadd.s32 1, %s15
  $region7: #{model_evolve_forward.1} parent=0 // loop_footer_branch
    %14 = sbr.rel target = $region3
  $region8: #{model_evolve_forward.1} parent=0 // loop_exit
    _

</llo_original>
